<compile_context>
chip_gen: v5e
topology: v5e:2x2
jax: 0.10.0
libtpu: 0.0.40
codegen_flags: <defaults>
</compile_context>

<pallas_src>
import jax
import jax.numpy as jnp
import numpy as np
from jax.experimental import pallas as pl
from jax.experimental.pallas import tpu as pltpu

D_IN, D_H1, D_H2, D_OUT = 66, 80, 40, 6
PAD = 128        # hidden dims padded to one native MXU/lane width
D_OUT_PAD = 8    # output padded to 8 lanes (32-B rows); sliced back to 6


def _round_up(n, m):
    return (n + m - 1) // m * m


def _pad2d(a, rows, cols):
    """Zero-pad a 2-D array up to (rows, cols)."""
    out = jnp.zeros((rows, cols), a.dtype)
    return out.at[: a.shape[0], : a.shape[1]].set(a)


def _mlp_kernel(x_ref, w1_ref, b1_ref, w2_ref, b2_ref, w3_ref, b3_ref,
                o_ref, xs_ref):
    tb = xs_ref.shape[0]
    # Zero-extend the (tb, 66) input tile into the (tb, 128) VMEM scratch.
    # Pad lanes are zeroed every step (megacore-safe) and hit zero weight rows,
    # so the result is exact.
    xs_ref[:, D_IN:] = jnp.zeros((tb, PAD - D_IN), xs_ref.dtype)
    xs_ref[:, :D_IN] = x_ref[...]

    wdt = w1_ref.dtype
    # layer 1: (tb,128) @ (128,128) + (1,128) -> ReLU   (f32 accumulate)
    h1 = jnp.dot(xs_ref[...], w1_ref[...], preferred_element_type=jnp.float32)
    h1 = jnp.maximum(h1 + b1_ref[...], 0.0)
    # layer 2: (tb,128) @ (128,128) + (1,128) -> ReLU
    h2 = jnp.dot(h1.astype(wdt), w2_ref[...], preferred_element_type=jnp.float32)
    h2 = jnp.maximum(h2 + b2_ref[...], 0.0)
    # layer 3: (tb,128) @ (128,8) + (1,8)   (only first 6 lanes meaningful)
    o = jnp.dot(h2.astype(wdt), w3_ref[...], preferred_element_type=jnp.float32)
    o_ref[...] = (o + b3_ref[...]).astype(o_ref.dtype)


def pad_params(params, dtype=jnp.float32):
    """Pad weights/biases once (hoisted out of the forward path)."""
    return dict(
        w1=_pad2d(params["w1"].astype(dtype), PAD, PAD),
        b1=_pad2d(params["b1"].astype(jnp.float32), 1, PAD),
        w2=_pad2d(params["w2"].astype(dtype), PAD, PAD),
        b2=_pad2d(params["b2"].astype(jnp.float32), 1, PAD),
        w3=_pad2d(params["w3"].astype(dtype), PAD, D_OUT_PAD),
        b3=_pad2d(params["b3"].astype(jnp.float32), 1, D_OUT_PAD),
    )


def info_extractor_forward(x, padded_params, *, tb=4096):
    """x: [B, 66].  padded_params: output of pad_params()."""
    B = x.shape[0]
    B8 = _round_up(B, 8)

    # Choose tile size / step count:
    #   * at most `tb` rows per tile (amortize per-step pipeline overhead),
    #   * >= 2 grid steps when the batch allows it (v7x megacore sharding),
    #   * steps evened out so batch padding stays minimal (< 8 rows typical).
    n_steps = max(pl.cdiv(B8, tb), 2 if B8 >= 16 else 1)
    tb_eff = _round_up(pl.cdiv(B8, n_steps), 8)
    Bp = tb_eff * n_steps
    if Bp != B:
        x = jnp.pad(x, ((0, Bp - B), (0, 0)))

    dt = x.dtype
    itemsize = jnp.dtype(dt).itemsize
    pp = padded_params
    rep = lambda i: (0, 0)  # weights / biases: same resident block every step

    cost = pl.CostEstimate(
        flops=2 * Bp * (PAD * PAD + PAD * PAD + PAD * D_OUT_PAD),
        transcendentals=0,
        bytes_accessed=(Bp * (D_IN * itemsize + D_OUT_PAD * 4)
                        + (2 * PAD * PAD + PAD * D_OUT_PAD) * itemsize
                        + (2 * PAD + D_OUT_PAD) * 4),
    )

    out = pl.pallas_call(
        _mlp_kernel,
        out_shape=jax.ShapeDtypeStruct((Bp, D_OUT_PAD), jnp.float32),
        grid_spec=pltpu.PrefetchScalarGridSpec(
            num_scalar_prefetch=0,
            grid=(Bp // tb_eff,),
            in_specs=[
                pl.BlockSpec((tb_eff, D_IN), lambda i: (i, 0)),   # x (unpadded)
                pl.BlockSpec((PAD, PAD), rep),                    # w1
                pl.BlockSpec((1, PAD), rep),                      # b1
                pl.BlockSpec((PAD, PAD), rep),                    # w2
                pl.BlockSpec((1, PAD), rep),                      # b2
                pl.BlockSpec((PAD, D_OUT_PAD), rep),              # w3
                pl.BlockSpec((1, D_OUT_PAD), rep),                # b3
            ],
            out_specs=pl.BlockSpec((tb_eff, D_OUT_PAD), lambda i: (i, 0)),
            scratch_shapes=[pltpu.VMEM((tb_eff, PAD), dt)],       # zero-extended x
        ),
        compiler_params=pltpu.CompilerParams(
            dimension_semantics=("parallel",),
            vmem_limit_bytes=32 * 1024 * 1024,
        ),
        cost_estimate=cost,
    )(x, pp["w1"], pp["b1"], pp["w2"], pp["b2"], pp["w3"], pp["b3"])

    return out[:B, :D_OUT]


def init_params(key):
    """Deterministic init matching nn.Linear's default U(-1/sqrt(fan_in), +...)."""
    ks = jax.random.split(key, 6)

    def linear(kw, kb, fan_in, fan_out):
        bound = 1.0 / np.sqrt(fan_in)
        w = jax.random.uniform(kw, (fan_in, fan_out), jnp.float32, -bound, bound)
        b = jax.random.uniform(kb, (1, fan_out), jnp.float32, -bound, bound)
        return w, b

    w1, b1 = linear(ks[0], ks[1], D_IN, D_H1)
    w2, b2 = linear(ks[2], ks[3], D_H1, D_H2)
    w3, b3 = linear(ks[4], ks[5], D_H2, D_OUT)
    return dict(w1=w1, b1=b1, w2=w2, b2=b2, w3=w3, b3=b3)


def reference_forward(x, p):
    h1 = jnp.maximum(x @ p["w1"] + p["b1"], 0.0)
    h2 = jnp.maximum(h1 @ p["w2"] + p["b2"], 0.0)
    return h2 @ p["w3"] + p["b3"]


if __name__ == "__main__":
    key = jax.random.PRNGKey(0)
    kx, kp = jax.random.split(key)

    B = 64  # small demo batch; production batches use tb up to 4096 tiles
    x = jax.random.normal(kx, (B, D_IN), jnp.float32)
    params = init_params(kp)
    padded = pad_params(params)   # padded once, cached across forwards

    out = info_extractor_forward(x, padded)
    out = jax.block_until_ready(out)

    ref = jax.block_until_ready(reference_forward(x, params))
    np.testing.assert_allclose(np.asarray(out), np.asarray(ref), rtol=1e-5, atol=1e-5)

    print("KERNEL_OK")
</pallas_src>

<mosaic_0001>
module attributes {stable_mosaic.version = 11 : i64} {
  func.func @_mlp_kernel(%arg0: i32, %arg1: memref<32x66xf32, #tpu.memory_space<vmem>>, %arg2: memref<128x128xf32, #tpu.memory_space<vmem>>, %arg3: memref<1x128xf32, #tpu.memory_space<vmem>>, %arg4: memref<128x128xf32, #tpu.memory_space<vmem>>, %arg5: memref<1x128xf32, #tpu.memory_space<vmem>>, %arg6: memref<128x8xf32, #tpu.memory_space<vmem>>, %arg7: memref<1x8xf32, #tpu.memory_space<vmem>>, %arg8: memref<32x8xf32, #tpu.memory_space<vmem>>, %arg9: memref<32x128xf32, #tpu.memory_space<vmem>>) attributes {dimension_semantics = [#tpu.dimension_semantics<parallel>], iteration_bounds = array<i64: 2>, scalar_prefetch = 0 : i64, scratch_operands = 1 : i64, tpu.core_type = #tpu.core_type<tc>, window_params = [{transform_indices = @transform_0, window_bounds = array<i64: 32, 66>}, {pipeline_mode = #tpu.pipeline_mode<synchronous>, transform_indices = @transform_1, window_bounds = array<i64: 128, 128>}, {pipeline_mode = #tpu.pipeline_mode<synchronous>, transform_indices = @transform_2, window_bounds = array<i64: 1, 128>}, {pipeline_mode = #tpu.pipeline_mode<synchronous>, transform_indices = @transform_3, window_bounds = array<i64: 128, 128>}, {pipeline_mode = #tpu.pipeline_mode<synchronous>, transform_indices = @transform_4, window_bounds = array<i64: 1, 128>}, {pipeline_mode = #tpu.pipeline_mode<synchronous>, transform_indices = @transform_5, window_bounds = array<i64: 128, 8>}, {pipeline_mode = #tpu.pipeline_mode<synchronous>, transform_indices = @transform_6, window_bounds = array<i64: 1, 8>}, {transform_indices = @transform_7, window_bounds = array<i64: 32, 8>}]} {
    %cst = arith.constant 0.000000e+00 : f32
    %0 = vector.broadcast %cst : f32 to vector<32x62xf32>
    %c0 = arith.constant 0 : index
    %c66 = arith.constant 66 : index
    %1 = vector.load %arg9[%c0, %c66] : memref<32x128xf32, #tpu.memory_space<vmem>>, vector<32x62xf32>
    tpu.vector_store %arg9[%c0, %c66], %0 {strides = array<i32>} : memref<32x128xf32, #tpu.memory_space<vmem>>, vector<32x62xf32>,
    %c0_0 = arith.constant 0 : index
    %c0_1 = arith.constant 0 : index
    %2 = vector.load %arg1[%c0_0, %c0_1] : memref<32x66xf32, #tpu.memory_space<vmem>>, vector<32x66xf32>
    %c0_2 = arith.constant 0 : index
    %c0_3 = arith.constant 0 : index
    %3 = vector.load %arg9[%c0_2, %c0_3] : memref<32x128xf32, #tpu.memory_space<vmem>>, vector<32x66xf32>
    tpu.vector_store %arg9[%c0_2, %c0_3], %2 {strides = array<i32>} : memref<32x128xf32, #tpu.memory_space<vmem>>, vector<32x66xf32>,
    %c0_4 = arith.constant 0 : index
    %c0_5 = arith.constant 0 : index
    %4 = vector.load %arg9[%c0_4, %c0_5] : memref<32x128xf32, #tpu.memory_space<vmem>>, vector<32x128xf32>
    %c0_6 = arith.constant 0 : index
    %c0_7 = arith.constant 0 : index
    %5 = vector.load %arg2[%c0_6, %c0_7] : memref<128x128xf32, #tpu.memory_space<vmem>>, vector<128x128xf32>
    %cst_8 = arith.constant dense<0.000000e+00> : vector<32x128xf32>
    %6 = tpu.matmul %4, %5, %cst_8 {dimension_numbers = #tpu.dot_dimension_numbers<[1], [0], [0], [1], [0, 0, 1, 1], [], []>} : vector<32x128xf32>, vector<128x128xf32>, vector<32x128xf32> -> vector<32x128xf32>
    %c0_9 = arith.constant 0 : index
    %c0_10 = arith.constant 0 : index
    %7 = vector.load %arg3[%c0_9, %c0_10] : memref<1x128xf32, #tpu.memory_space<vmem>>, vector<1x128xf32>
    %8 = vector.broadcast %7 : vector<1x128xf32> to vector<32x128xf32>
    %9 = arith.addf %6, %8 : vector<32x128xf32>
    %cst_11 = arith.constant 0.000000e+00 : f32
    %10 = vector.broadcast %cst_11 : f32 to vector<32x128xf32>
    %11 = arith.maximumf %9, %10 : vector<32x128xf32>
    %c0_12 = arith.constant 0 : index
    %c0_13 = arith.constant 0 : index
    %12 = vector.load %arg4[%c0_12, %c0_13] : memref<128x128xf32, #tpu.memory_space<vmem>>, vector<128x128xf32>
    %cst_14 = arith.constant dense<0.000000e+00> : vector<32x128xf32>
    %13 = tpu.matmul %11, %12, %cst_14 {dimension_numbers = #tpu.dot_dimension_numbers<[1], [0], [0], [1], [0, 0, 1, 1], [], []>} : vector<32x128xf32>, vector<128x128xf32>, vector<32x128xf32> -> vector<32x128xf32>
    %c0_15 = arith.constant 0 : index
    %c0_16 = arith.constant 0 : index
    %14 = vector.load %arg5[%c0_15, %c0_16] : memref<1x128xf32, #tpu.memory_space<vmem>>, vector<1x128xf32>
    %15 = vector.broadcast %14 : vector<1x128xf32> to vector<32x128xf32>
    %16 = arith.addf %13, %15 : vector<32x128xf32>
    %cst_17 = arith.constant 0.000000e+00 : f32
    %17 = vector.broadcast %cst_17 : f32 to vector<32x128xf32>
    %18 = arith.maximumf %16, %17 : vector<32x128xf32>
    %c0_18 = arith.constant 0 : index
    %c0_19 = arith.constant 0 : index
    %19 = vector.load %arg6[%c0_18, %c0_19] : memref<128x8xf32, #tpu.memory_space<vmem>>, vector<128x8xf32>
    %cst_20 = arith.constant dense<0.000000e+00> : vector<32x8xf32>
    %20 = tpu.matmul %18, %19, %cst_20 {dimension_numbers = #tpu.dot_dimension_numbers<[1], [0], [0], [1], [0, 0, 1, 1], [], []>} : vector<32x128xf32>, vector<128x8xf32>, vector<32x8xf32> -> vector<32x8xf32>
    %c0_21 = arith.constant 0 : index
    %c0_22 = arith.constant 0 : index
    %21 = vector.load %arg7[%c0_21, %c0_22] : memref<1x8xf32, #tpu.memory_space<vmem>>, vector<1x8xf32>
    %22 = vector.broadcast %21 : vector<1x8xf32> to vector<32x8xf32>
    %23 = arith.addf %20, %22 : vector<32x8xf32>
    %c0_23 = arith.constant 0 : index
    %c0_24 = arith.constant 0 : index
    %24 = vector.load %arg8[%c0_23, %c0_24] : memref<32x8xf32, #tpu.memory_space<vmem>>, vector<32x8xf32>
    tpu.vector_store %arg8[%c0_23, %c0_24], %23 {strides = array<i32>} : memref<32x8xf32, #tpu.memory_space<vmem>>, vector<32x8xf32>,
    return
  }
  func.func @transform_0(%arg0: i32) -> (i32, i32) {
    %c0_i32 = arith.constant 0 : i32
    %c0_i32_0 = arith.constant 0 : i32
    return %arg0, %c0_i32 : i32, i32
  }
  func.func @transform_1(%arg0: i32) -> (i32, i32) {
    %c0_i32 = arith.constant 0 : i32
    %c0_i32_0 = arith.constant 0 : i32
    %c0_i32_1 = arith.constant 0 : i32
    return %c0_i32, %c0_i32_0 : i32, i32
  }
  func.func @transform_2(%arg0: i32) -> (i32, i32) {
    %c0_i32 = arith.constant 0 : i32
    %c0_i32_0 = arith.constant 0 : i32
    %c0_i32_1 = arith.constant 0 : i32
    return %c0_i32, %c0_i32_0 : i32, i32
  }
  func.func @transform_3(%arg0: i32) -> (i32, i32) {
    %c0_i32 = arith.constant 0 : i32
    %c0_i32_0 = arith.constant 0 : i32
    %c0_i32_1 = arith.constant 0 : i32
    return %c0_i32, %c0_i32_0 : i32, i32
  }
  func.func @transform_4(%arg0: i32) -> (i32, i32) {
    %c0_i32 = arith.constant 0 : i32
    %c0_i32_0 = arith.constant 0 : i32
    %c0_i32_1 = arith.constant 0 : i32
    return %c0_i32, %c0_i32_0 : i32, i32
  }
  func.func @transform_5(%arg0: i32) -> (i32, i32) {
    %c0_i32 = arith.constant 0 : i32
    %c0_i32_0 = arith.constant 0 : i32
    %c0_i32_1 = arith.constant 0 : i32
    return %c0_i32, %c0_i32_0 : i32, i32
  }
  func.func @transform_6(%arg0: i32) -> (i32, i32) {
    %c0_i32 = arith.constant 0 : i32
    %c0_i32_0 = arith.constant 0 : i32
    %c0_i32_1 = arith.constant 0 : i32
    return %c0_i32, %c0_i32_0 : i32, i32
  }
  func.func @transform_7(%arg0: i32) -> (i32, i32) {
    %c0_i32 = arith.constant 0 : i32
    %c0_i32_0 = arith.constant 0 : i32
    return %arg0, %c0_i32 : i32, i32
  }
}

</mosaic_0001>

<llo_original>
// kernel: tpu_custom_call.1
$region0: #{tpu_custom_call.1}
  #allocation0 [shape = 'u32[]', space=smem, size = 0x4, offset = 0x4, fixed_abs, tag = 'smem constant byte address 0x4 - core index']
  #allocation1 [shape = 'u32[72,128]{1,0:T(1,128)}', space=vmem, size = 0x9000, scoped, tag = 'internal scratch']
  #allocation2 [shape = 'f32[32,128]{1,0:T(8,128)}', space=vmem, size = 0x4000, scoped, tag = 'scratch operand']
  %s0 = inlined_call_operand.hbm [shape: f32[64,66], index: 0, kind: input, shape index: {}]
  %s1 = inlined_call_operand.vmem [shape: f32[128,128], index: 1, kind: input, shape index: {}]
  %s2 = inlined_call_operand.vmem [shape: f32[1,128], index: 2, kind: input, shape index: {}]
  %s3 = inlined_call_operand.hbm [shape: f32[128,128], index: 3, kind: input, shape index: {}]
  %s4 = inlined_call_operand.vmem [shape: f32[1,128], index: 4, kind: input, shape index: {}]
  %s5 = inlined_call_operand.vmem [shape: f32[128,8], index: 5, kind: input, shape index: {}]
  %s6 = inlined_call_operand.vmem [shape: f32[1,8], index: 6, kind: input, shape index: {}]
  %s7 = inlined_call_operand.vmem [shape: f32[64,8], index: 7, kind: output, shape index: {}]
  %s8 = sld [smem:[#allocation0]]
  $region69: #{tpu_custom_call.1} parent=0
    _
  %s10 = ssub.s32 1, %s8
  %s11 = scalar_select 0, %s10, %s8
  $region1: #{tpu_custom_call.1} parent=0
    #allocation3 [shape = 'u8[32768]{0}', space=vmem, size = 0x8000, scoped, tag = 'input window, operand 0']
    #allocation4 [shape = 's32[2]{0}', space=sflag, size = 0x8, scoped, tag = 'scoped memory for tpu_custom_call.1']
    #allocation5 [shape = 'u8[65536]{0}', space=vmem, size = 0x10000, scoped, tag = 'input window, operand 3, single buffered']
    #allocation6 [shape = 's32[1]{0}', space=sflag, size = 0x4, scoped, tag = 'scoped memory for tpu_custom_call.1']
    %12 = vsyncpa [#allocation4], 0
    %s13 = scalar_lea.sflag [#allocation4], 1
    %14 = vsyncpa %s13, 0
    %15 = vsyncpa [#allocation6], 0
    loop: start=0, step=1, limit=4
    $region2: #{tpu_custom_call.1} parent=1 // loop_pre_header
      _
    $region3: #{tpu_custom_call.1} parent=1 // loop_header
      %s17 = sphi 0, %s21
      %p18 = scmp.ge.s32.totalorder %s17, 4
      %s27 = sphi 0, %s29
      %s30 = sphi 0, %s27
      %s31 = sphi 0, %s30
      %s47 = sphi 0, %s31
      %s51 = sphi 0, %s51
      %s53 = sphi 0, %s51
      %s54 = sphi 0, %s53
      %s68 = sphi 0, %s54
      %s72 = sphi 0, %s72
      %s74 = sphi 0, %s72
      %s75 = sphi 0, %s74
      %s89 = sphi 0, %s75
      %s93 = sphi 0, %s93
      %s95 = sphi 0, %s93
      %s96 = sphi 0, %s95
      %s110 = sphi 0, %s96
      %s114 = sphi 0, %s114
      %s116 = sphi 0, %s114
      %s117 = sphi 0, %s116
      %s131 = sphi 0, %s117
      %s135 = sphi 0, %s135
      %s137 = sphi 0, %s135
      %s138 = sphi 0, %s137
      %s152 = sphi 0, %s138
      %s156 = sphi 0, %s156
      %s158 = sphi 0, %s156
      %s159 = sphi 0, %s158
      %s173 = sphi 0, %s159
      %s179 = sphi 0, %s181
      %s182 = sphi 0, %s179
      %s183 = sphi 0, %s182
      %s199 = sphi 0, %s183
    $region4: #{tpu_custom_call.1} parent=1 // loop_header_branch
      %20 = sbr.rel (%p18) target = $region8
    $region5: #{tpu_custom_call.1} parent=1 // loop_body
      %s22 = ssub.s32 %s17, 1
      %s23 = ssub.s32 %s17, 2
      %s24 = sadd.s32 %s17, 1
      %s25 = ssub.s32 %s17, %s24
      %p26 = scmp.eq.s32.totalorder %s25, 0
      %s28 = sadd.s32 %s27, 1
      %s29 = scalar_select %p26, %s27, %s28
      %p32 = pneg %p26
      %p33 = scmp.eq.s32.totalorder %s17, 1
      %p34 = por %p32, %p33
      %p35 = scmp.ne.s32.totalorder %s27, %s30
      %p36 = scmp.eq.s32.totalorder %s17, 0
      %p37 = por %p35, %p36
      %p38 = scmp.ne.s32.totalorder %s27, %s30
      %p39 = scmp.eq.s32.totalorder %s22, 1
      %p40 = por %p38, %p39
      %p41 = scmp.ne.s32.totalorder %s30, %s31
      %p42 = scmp.eq.s32.totalorder %s22, 0
      %p43 = por %p41, %p42
      %p44 = scmp.ne.s32.totalorder %s30, %s31
      %p45 = scmp.eq.s32.totalorder %s23, 1
      %p46 = por %p44, %p45
      %p48 = scmp.ne.s32.totalorder %s31, %s47
      %p49 = scmp.eq.s32.totalorder %s23, 0
      %p50 = por %p48, %p49
      %s52 = sadd.s32 %s51, 1
      %p55 = scmp.eq.s32.totalorder %s17, 1
      %p56 = scmp.ne.s32.totalorder %s51, %s53
      %p57 = scmp.eq.s32.totalorder %s17, 0
      %p58 = por %p56, %p57
      %p59 = scmp.ne.s32.totalorder %s51, %s53
      %p60 = scmp.eq.s32.totalorder %s22, 1
      %p61 = por %p59, %p60
      %p62 = scmp.ne.s32.totalorder %s53, %s54
      %p63 = scmp.eq.s32.totalorder %s22, 0
      %p64 = por %p62, %p63
      %p65 = scmp.ne.s32.totalorder %s53, %s54
      %p66 = scmp.eq.s32.totalorder %s23, 1
      %p67 = por %p65, %p66
      %p69 = scmp.ne.s32.totalorder %s54, %s68
      %p70 = scmp.eq.s32.totalorder %s23, 0
      %p71 = por %p69, %p70
      %s73 = sadd.s32 %s72, 1
      %p76 = scmp.eq.s32.totalorder %s17, 1
      %p77 = scmp.ne.s32.totalorder %s72, %s74
      %p78 = scmp.eq.s32.totalorder %s17, 0
      %p79 = por %p77, %p78
      %p80 = scmp.ne.s32.totalorder %s72, %s74
      %p81 = scmp.eq.s32.totalorder %s22, 1
      %p82 = por %p80, %p81
      %p83 = scmp.ne.s32.totalorder %s74, %s75
      %p84 = scmp.eq.s32.totalorder %s22, 0
      %p85 = por %p83, %p84
      %p86 = scmp.ne.s32.totalorder %s74, %s75
      %p87 = scmp.eq.s32.totalorder %s23, 1
      %p88 = por %p86, %p87
      %p90 = scmp.ne.s32.totalorder %s75, %s89
      %p91 = scmp.eq.s32.totalorder %s23, 0
      %p92 = por %p90, %p91
      %s94 = sadd.s32 %s93, 1
      %p97 = scmp.eq.s32.totalorder %s17, 1
      %p98 = scmp.ne.s32.totalorder %s93, %s95
      %p99 = scmp.eq.s32.totalorder %s17, 0
      %p100 = por %p98, %p99
      %p101 = scmp.ne.s32.totalorder %s93, %s95
      %p102 = scmp.eq.s32.totalorder %s22, 1
      %p103 = por %p101, %p102
      %p104 = scmp.ne.s32.totalorder %s95, %s96
      %p105 = scmp.eq.s32.totalorder %s22, 0
      %p106 = por %p104, %p105
      %p107 = scmp.ne.s32.totalorder %s95, %s96
      %p108 = scmp.eq.s32.totalorder %s23, 1
      %p109 = por %p107, %p108
      %p111 = scmp.ne.s32.totalorder %s96, %s110
      %p112 = scmp.eq.s32.totalorder %s23, 0
      %p113 = por %p111, %p112
      %s115 = sadd.s32 %s114, 1
      %p118 = scmp.eq.s32.totalorder %s17, 1
      %p119 = scmp.ne.s32.totalorder %s114, %s116
      %p120 = scmp.eq.s32.totalorder %s17, 0
      %p121 = por %p119, %p120
      %p122 = scmp.ne.s32.totalorder %s114, %s116
      %p123 = scmp.eq.s32.totalorder %s22, 1
      %p124 = por %p122, %p123
      %p125 = scmp.ne.s32.totalorder %s116, %s117
      %p126 = scmp.eq.s32.totalorder %s22, 0
      %p127 = por %p125, %p126
      %p128 = scmp.ne.s32.totalorder %s116, %s117
      %p129 = scmp.eq.s32.totalorder %s23, 1
      %p130 = por %p128, %p129
      %p132 = scmp.ne.s32.totalorder %s117, %s131
      %p133 = scmp.eq.s32.totalorder %s23, 0
      %p134 = por %p132, %p133
      %s136 = sadd.s32 %s135, 1
      %p139 = scmp.eq.s32.totalorder %s17, 1
      %p140 = scmp.ne.s32.totalorder %s135, %s137
      %p141 = scmp.eq.s32.totalorder %s17, 0
      %p142 = por %p140, %p141
      %p143 = scmp.ne.s32.totalorder %s135, %s137
      %p144 = scmp.eq.s32.totalorder %s22, 1
      %p145 = por %p143, %p144
      %p146 = scmp.ne.s32.totalorder %s137, %s138
      %p147 = scmp.eq.s32.totalorder %s22, 0
      %p148 = por %p146, %p147
      %p149 = scmp.ne.s32.totalorder %s137, %s138
      %p150 = scmp.eq.s32.totalorder %s23, 1
      %p151 = por %p149, %p150
      %p153 = scmp.ne.s32.totalorder %s138, %s152
      %p154 = scmp.eq.s32.totalorder %s23, 0
      %p155 = por %p153, %p154
      %s157 = sadd.s32 %s156, 1
      %p160 = scmp.eq.s32.totalorder %s17, 1
      %p161 = scmp.ne.s32.totalorder %s156, %s158
      %p162 = scmp.eq.s32.totalorder %s17, 0
      %p163 = por %p161, %p162
      %p164 = scmp.ne.s32.totalorder %s156, %s158
      %p165 = scmp.eq.s32.totalorder %s22, 1
      %p166 = por %p164, %p165
      %p167 = scmp.ne.s32.totalorder %s158, %s159
      %p168 = scmp.eq.s32.totalorder %s22, 0
      %p169 = por %p167, %p168
      %p170 = scmp.ne.s32.totalorder %s158, %s159
      %p171 = scmp.eq.s32.totalorder %s23, 1
      %p172 = por %p170, %p171
      %p174 = scmp.ne.s32.totalorder %s159, %s173
      %p175 = scmp.eq.s32.totalorder %s23, 0
      %p176 = por %p174, %p175
      %s177 = ssub.s32 %s17, %s24
      %p178 = scmp.eq.s32.totalorder %s177, 0
      %s180 = sadd.s32 %s179, 1
      %s181 = scalar_select %p178, %s179, %s180
      %p184 = pneg %p178
      %p185 = scmp.eq.s32.totalorder %s17, 1
      %p186 = por %p184, %p185
      %p187 = scmp.ne.s32.totalorder %s179, %s182
      %p188 = scmp.eq.s32.totalorder %s17, 0
      %p189 = por %p187, %p188
      %p190 = scmp.ne.s32.totalorder %s179, %s182
      %p191 = scmp.eq.s32.totalorder %s22, 1
      %p192 = por %p190, %p191
      %p193 = scmp.ne.s32.totalorder %s182, %s183
      %p194 = scmp.eq.s32.totalorder %s22, 0
      %p195 = por %p193, %p194
      %p196 = scmp.ne.s32.totalorder %s182, %s183
      %p197 = scmp.eq.s32.totalorder %s23, 1
      %p198 = por %p196, %p197
      %p200 = scmp.ne.s32.totalorder %s183, %s199
      %p201 = scmp.eq.s32.totalorder %s23, 0
      %p202 = por %p200, %p201
      %p203 = scmp.le.s32.totalorder 1, %s17
      %p204 = scmp.lt.s32.totalorder %s17, 3
      %p205 = pnand %p203, %p204
      %p206 = pneg %p205
      // Predicated region
      $region9: #{tpu_custom_call.1} parent=5 // pred_check
        _
      $region10: #{tpu_custom_call.1} parent=5 // pred_check_branch
        %208 = sbr.rel (%p205) target = $region12
      $region11: #{tpu_custom_call.1} parent=5 // pred_region
        %s209 = ssub.s32 %s17, 1
        // Predicated region
        $region13: #{tpu_custom_call.1} parent=11 // pred_check
          %p210 = pneg %p64
        $region14: #{tpu_custom_call.1} parent=11 // pred_check_branch
          %212 = sbr.rel (%p210) target = $region16
        $region15: #{tpu_custom_call.1} parent=11 // pred_region
          _
        $region16: #{tpu_custom_call.1} parent=11 // pred_fallthru
          _
        // Predicated region
        $region17: #{tpu_custom_call.1} parent=11 // pred_check
          %p213 = pneg %p85
        $region18: #{tpu_custom_call.1} parent=11 // pred_check_branch
          %215 = sbr.rel (%p213) target = $region20
        $region19: #{tpu_custom_call.1} parent=11 // pred_region
          _
        $region20: #{tpu_custom_call.1} parent=11 // pred_fallthru
          _
        // Predicated region
        $region21: #{tpu_custom_call.1} parent=11 // pred_check
          %p216 = pneg %p106
        $region22: #{tpu_custom_call.1} parent=11 // pred_check_branch
          %218 = sbr.rel (%p216) target = $region24
        $region23: #{tpu_custom_call.1} parent=11 // pred_region
          %220 = vsyncadd [#allocation6], 0
          %s221 = sshll.u32 %s3, 4
          %s222 = int_to_ptr.hbm [resolvable:$true] %s221
          %s223 = sshll.u32 [#allocation5], 4
          %s224 = int_to_ptr.vmem [resolvable:$true] %s223
          %229 = dma.hbm_to_vmem [thread:$0]  %s222, 2048, %s224, [#allocation6], 128, 128, 8
        $region24: #{tpu_custom_call.1} parent=11 // pred_fallthru
          _
        // Predicated region
        $region25: #{tpu_custom_call.1} parent=11 // pred_check
          %p230 = pneg %p127
        $region26: #{tpu_custom_call.1} parent=11 // pred_check_branch
          %232 = sbr.rel (%p230) target = $region28
        $region27: #{tpu_custom_call.1} parent=11 // pred_region
          _
        $region28: #{tpu_custom_call.1} parent=11 // pred_fallthru
          _
        // Predicated region
        $region29: #{tpu_custom_call.1} parent=11 // pred_check
          %p233 = pneg %p148
        $region30: #{tpu_custom_call.1} parent=11 // pred_check_branch
          %235 = sbr.rel (%p233) target = $region32
        $region31: #{tpu_custom_call.1} parent=11 // pred_region
          _
        $region32: #{tpu_custom_call.1} parent=11 // pred_fallthru
          _
        // Predicated region
        $region33: #{tpu_custom_call.1} parent=11 // pred_check
          %p236 = pneg %p169
        $region34: #{tpu_custom_call.1} parent=11 // pred_check_branch
          %238 = sbr.rel (%p236) target = $region36
        $region35: #{tpu_custom_call.1} parent=11 // pred_region
          _
        $region36: #{tpu_custom_call.1} parent=11 // pred_fallthru
          _
      $region12: #{tpu_custom_call.1} parent=5 // pred_fallthru
        _
      %p239 = scmp.lt.s32.totalorder %s17, 2
      // Predicated region
      $region37: #{tpu_custom_call.1} parent=5 // pred_check
        %p240 = pneg %p239
      $region38: #{tpu_custom_call.1} parent=5 // pred_check_branch
        %242 = sbr.rel (%p240) target = $region40
      $region39: #{tpu_custom_call.1} parent=5 // pred_region
        // Predicated region
        $region41: #{tpu_custom_call.1} parent=39 // pred_check
          %p243 = pneg %p37
        $region42: #{tpu_custom_call.1} parent=39 // pred_check_branch
          %245 = sbr.rel (%p243) target = $region44
        $region43: #{tpu_custom_call.1} parent=39 // pred_region
          %s246 = sand.u32 %s27, 1
          %s247 = scalar_lea.sflag [#allocation4], %s246
          %s248 = sand.u32 %s27, 1
          %s249 = smul.addr %s248, 32
          %s250 = scalar_lea.vmem [#allocation3], %s249
          %s251 = smul.u32 4, %s17
          %253 = vsyncadd %s247, 0
          %s254 = smul.addr %s251, 8
          %s255 = scalar_lea.hbm %s0, %s254
          %s256 = sshll.u32 %s255, 4
          %s257 = int_to_ptr.hbm [resolvable:$true] %s256
          %s258 = sshll.u32 %s250, 4
          %s259 = int_to_ptr.vmem [resolvable:$true] %s258
          %264 = dma.hbm_to_vmem [thread:$0]  %s257, 512, %s259, %s247, 128, 128, 8
        $region44: #{tpu_custom_call.1} parent=39 // pred_fallthru
          _
      $region40: #{tpu_custom_call.1} parent=5 // pred_fallthru
        _
      %p265 = scmp.le.s32.totalorder 1, %s17
      %p266 = scmp.lt.s32.totalorder %s17, 3
      %p267 = pnand %p265, %p266
      %p268 = pneg %p267
      // Predicated region
      $region45: #{tpu_custom_call.1} parent=5 // pred_check
        _
      $region46: #{tpu_custom_call.1} parent=5 // pred_check_branch
        %270 = sbr.rel (%p267) target = $region48
      $region47: #{tpu_custom_call.1} parent=5 // pred_region
        %s271 = ssub.s32 %s17, 1
        %s272 = sand.u32 %s30, 1
        %s273 = scalar_lea.sflag [#allocation4], %s272
        %s274 = sand.u32 %s30, 1
        %s275 = smul.addr %s274, 32
        %s276 = scalar_lea.vmem [#allocation3], %s275
        // Predicated region
        $region49: #{tpu_custom_call.1} parent=47 // pred_check
          %p277 = pneg %p43
        $region50: #{tpu_custom_call.1} parent=47 // pred_check_branch
          %279 = sbr.rel (%p277) target = $region52
        $region51: #{tpu_custom_call.1} parent=47 // pred_region
          %281 = dma.done %s273, 512
        $region52: #{tpu_custom_call.1} parent=47 // pred_fallthru
          _
        // Predicated region
        $region53: #{tpu_custom_call.1} parent=47 // pred_check
          %p282 = pneg %p106
        $region54: #{tpu_custom_call.1} parent=47 // pred_check_branch
          %284 = sbr.rel (%p282) target = $region56
        $region55: #{tpu_custom_call.1} parent=47 // pred_region
          %286 = dma.done [#allocation6], 2048
        $region56: #{tpu_custom_call.1} parent=47 // pred_fallthru
          _
        %s287 = sand.u32 %s30, 1
        %s288 = scalar_lea.sflag [#allocation4], %s287
        %s289 = sand.u32 %s30, 1
        %s290 = smul.addr %s289, 32
        %s291 = scalar_lea.vmem [#allocation3], %s290
        %p292 = pneg %p43
        %p293 = pneg %p40
        %p294 = pneg %p64
        %p295 = pneg %p61
        %p296 = pneg %p85
        %p297 = pneg %p82
        %p298 = pneg %p106
        %p299 = pneg %p103
        %p300 = pneg %p127
        %p301 = pneg %p124
        %p302 = pneg %p148
        %p303 = pneg %p145
        %p304 = pneg %p169
        %p305 = pneg %p166
        %p306 = pneg %p195
        %p307 = pneg %p192
        %s308 = smul.u32 4, %s22
        %p309 = scmp.lt.s32.totalorder %s308, 7
        %s310 = scalar_select %p309, %s308, 7
        %s311 = smul.addr %s310, 8
        %s312 = scalar_lea.vmem %s7, %s311
        %s313 = smul.u32 4, %s22
        %s314 = smul.u32 4, %s22
        %p315 = scmp.lt.s32.totalorder %s314, 7
        %s316 = scalar_select %p315, %s314, 7
        %s317 = smul.addr %s316, 8
        %s318 = scalar_lea.vmem %s7, %s317
        %s319 = smul.u32 4, %s22
        %vm320 = vcmask 1048080
        %321 = vst.msk [vmem:[#allocation2] sm:$0xff] %vm320, 0.0
        %322 = vst.msk [vmem:[#allocation2 + $0x8] sm:$0xff] %vm320, 0.0
        %323 = vst.msk [vmem:[#allocation2 + $0x10] sm:$0xff] %vm320, 0.0
        %324 = vst.msk [vmem:[#allocation2 + $0x18] sm:$0xff] %vm320, 0.0
        %v325 = vld [vmem:[%s276] sm:$0xff]
        %v326 = vld [vmem:[%s276 + $0x8] sm:$0xff]
        %v327 = vld [vmem:[%s276 + $0x10] sm:$0xff]
        %v328 = vld [vmem:[%s276 + $0x18] sm:$0xff]
        %vm329 = vcmask 539648
        %330 = vst.msk [vmem:[#allocation2] sm:$0xff] %vm329, %v325
        %331 = vst.msk [vmem:[#allocation2 + $0x8] sm:$0xff] %vm329, %v326
        %332 = vst.msk [vmem:[#allocation2 + $0x10] sm:$0xff] %vm329, %v327
        %333 = vst.msk [vmem:[#allocation2 + $0x18] sm:$0xff] %vm329, %v328
        %v334 = vld [vmem:[#allocation2] sm:$0xff]
        %v335 = vld [vmem:[#allocation2 + $0x8] sm:$0xff]
        %v336 = vld [vmem:[#allocation2 + $0x10] sm:$0xff]
        %v337 = vld [vmem:[#allocation2 + $0x18] sm:$0xff]
        %v338 = vld [vmem:[%s1] sm:$0xff]
        %v339 = vld [vmem:[%s1 + $0x8] sm:$0xff]
        %v340 = vld [vmem:[%s1 + $0x10] sm:$0xff]
        %v341 = vld [vmem:[%s1 + $0x18] sm:$0xff]
        %v342 = vld [vmem:[%s1 + $0x20] sm:$0xff]
        %v343 = vld [vmem:[%s1 + $0x28] sm:$0xff]
        %v344 = vld [vmem:[%s1 + $0x30] sm:$0xff]
        %v345 = vld [vmem:[%s1 + $0x38] sm:$0xff]
        %v346 = vld [vmem:[%s1 + $0x40] sm:$0xff]
        %v347 = vld [vmem:[%s1 + $0x48] sm:$0xff]
        %v348 = vld [vmem:[%s1 + $0x50] sm:$0xff]
        %v349 = vld [vmem:[%s1 + $0x58] sm:$0xff]
        %v350 = vld [vmem:[%s1 + $0x60] sm:$0xff]
        %v351 = vld [vmem:[%s1 + $0x68] sm:$0xff]
        %v352 = vld [vmem:[%s1 + $0x70] sm:$0xff]
        %v353 = vld [vmem:[%s1 + $0x78] sm:$0xff]
        %v354 = vld [vmem:[%s2] sm:$0x1]
        %v356 = vperm.slane %v354, 0
        %358 = vmatpush.msra.mxu0 %v353
        %359 = vmatpush.msra.mxu0 %v352
        %360 = vmatpush.msra.mxu0 %v351
        %361 = vmatpush.msra.mxu0 %v350
        %362 = vmatpush.msra.mxu0 %v349
        %363 = vmatpush.msra.mxu0 %v348
        %364 = vmatpush.msra.mxu0 %v347
        %365 = vmatpush.msra.mxu0 %v346
        %366 = vmatpush.msra.mxu0 %v345
        %367 = vmatpush.msra.mxu0 %v344
        %368 = vmatpush.msra.mxu0 %v343
        %369 = vmatpush.msra.mxu0 %v342
        %370 = vmatpush.msra.mxu0 %v341
        %371 = vmatpush.msra.mxu0 %v340
        %372 = vmatpush.msra.mxu0 %v339
        %373 = vmatpush.msra.mxu0 %v338
        %374 = vmatmul.f32.gmra.mxu0 %v334
        %v375 = vpop.f32.mrf.mxu0
        %v376 = vadd.f32 %v356, %v375
        %377 = vmatmul.f32.gmra.mxu0 %v335
        %v378 = vpop.f32.mrf.mxu0
        %v379 = vadd.f32 %v356, %v378
        %380 = vmatmul.f32.gmra.mxu0 %v336
        %v381 = vpop.f32.mrf.mxu0
        %v382 = vadd.f32 %v356, %v381
        %383 = vmatmul.f32.gmra.mxu0 %v337
        %v384 = vpop.f32.mrf.mxu0
        %v385 = vadd.f32 %v356, %v384
        %386 = vdwg.mxu0
        %v387 = vmax.f32 %v376, 0.0
        %v388 = vmax.f32 %v379, 0.0
        %v389 = vmax.f32 %v382, 0.0
        %v390 = vmax.f32 %v385, 0.0
        %v391 = vld [vmem:[#allocation5] sm:$0xff]
        %v392 = vld [vmem:[#allocation5 + $0x8] sm:$0xff]
        %v393 = vld [vmem:[#allocation5 + $0x10] sm:$0xff]
        %v394 = vld [vmem:[#allocation5 + $0x18] sm:$0xff]
        %v395 = vld [vmem:[#allocation5 + $0x20] sm:$0xff]
        %v396 = vld [vmem:[#allocation5 + $0x28] sm:$0xff]
        %v397 = vld [vmem:[#allocation5 + $0x30] sm:$0xff]
        %v398 = vld [vmem:[#allocation5 + $0x38] sm:$0xff]
        %v399 = vld [vmem:[#allocation5 + $0x40] sm:$0xff]
        %v400 = vld [vmem:[#allocation5 + $0x48] sm:$0xff]
        %v401 = vld [vmem:[#allocation5 + $0x50] sm:$0xff]
        %v402 = vld [vmem:[#allocation5 + $0x58] sm:$0xff]
        %v403 = vld [vmem:[#allocation5 + $0x60] sm:$0xff]
        %v404 = vld [vmem:[#allocation5 + $0x68] sm:$0xff]
        %v405 = vld [vmem:[#allocation5 + $0x70] sm:$0xff]
        %v406 = vld [vmem:[#allocation5 + $0x78] sm:$0xff]
        %v407 = vld [vmem:[%s4] sm:$0x1]
        %v409 = vperm.slane %v407, 0
        %411 = vmatpush.msra.mxu0 %v406
        %412 = vmatpush.msra.mxu0 %v405
        %413 = vmatpush.msra.mxu0 %v404
        %414 = vmatpush.msra.mxu0 %v403
        %415 = vmatpush.msra.mxu0 %v402
        %416 = vmatpush.msra.mxu0 %v401
        %417 = vmatpush.msra.mxu0 %v400
        %418 = vmatpush.msra.mxu0 %v399
        %419 = vmatpush.msra.mxu0 %v398
        %420 = vmatpush.msra.mxu0 %v397
        %421 = vmatpush.msra.mxu0 %v396
        %422 = vmatpush.msra.mxu0 %v395
        %423 = vmatpush.msra.mxu0 %v394
        %424 = vmatpush.msra.mxu0 %v393
        %425 = vmatpush.msra.mxu0 %v392
        %426 = vmatpush.msra.mxu0 %v391
        %427 = vmatmul.f32.gmra.mxu0 %v387
        %v428 = vpop.f32.mrf.mxu0
        %v429 = vadd.f32 %v409, %v428
        %430 = vmatmul.f32.gmra.mxu0 %v388
        %v431 = vpop.f32.mrf.mxu0
        %v432 = vadd.f32 %v409, %v431
        %433 = vmatmul.f32.gmra.mxu0 %v389
        %v434 = vpop.f32.mrf.mxu0
        %v435 = vadd.f32 %v409, %v434
        %436 = vmatmul.f32.gmra.mxu0 %v390
        %v437 = vpop.f32.mrf.mxu0
        %v438 = vadd.f32 %v409, %v437
        %439 = vdwg.mxu0
        %v440 = vmax.f32 %v429, 0.0
        %v441 = vmax.f32 %v432, 0.0
        %v442 = vmax.f32 %v435, 0.0
        %v443 = vmax.f32 %v438, 0.0
        %v444 = vld [vmem:[%s5] sm:$0xff]
        %v445 = vld [vmem:[%s5 + $0x8] sm:$0xff]
        %v446 = vld [vmem:[%s5 + $0x10] sm:$0xff]
        %v447 = vld [vmem:[%s5 + $0x18] sm:$0xff]
        %v448 = vld [vmem:[%s5 + $0x20] sm:$0xff]
        %v449 = vld [vmem:[%s5 + $0x28] sm:$0xff]
        %v450 = vld [vmem:[%s5 + $0x30] sm:$0xff]
        %v451 = vld [vmem:[%s5 + $0x38] sm:$0xff]
        %v452 = vld [vmem:[%s5 + $0x40] sm:$0xff]
        %v453 = vld [vmem:[%s5 + $0x48] sm:$0xff]
        %v454 = vld [vmem:[%s5 + $0x50] sm:$0xff]
        %v455 = vld [vmem:[%s5 + $0x58] sm:$0xff]
        %v456 = vld [vmem:[%s5 + $0x60] sm:$0xff]
        %v457 = vld [vmem:[%s5 + $0x68] sm:$0xff]
        %v458 = vld [vmem:[%s5 + $0x70] sm:$0xff]
        %v459 = vld [vmem:[%s5 + $0x78] sm:$0xff]
        %v460 = vld [vmem:[%s6] sm:$0x1]
        %v462 = vperm.slane %v460, 0
        %464 = vmatpush.msra.mxu0 %v459
        %465 = vmatpush.msra.mxu0 %v458
        %466 = vmatpush.msra.mxu0 %v457
        %467 = vmatpush.msra.mxu0 %v456
        %468 = vmatpush.msra.mxu0 %v455
        %469 = vmatpush.msra.mxu0 %v454
        %470 = vmatpush.msra.mxu0 %v453
        %471 = vmatpush.msra.mxu0 %v452
        %472 = vmatpush.msra.mxu0 %v451
        %473 = vmatpush.msra.mxu0 %v450
        %474 = vmatpush.msra.mxu0 %v449
        %475 = vmatpush.msra.mxu0 %v448
        %476 = vmatpush.msra.mxu0 %v447
        %477 = vmatpush.msra.mxu0 %v446
        %478 = vmatpush.msra.mxu0 %v445
        %479 = vmatpush.msra.mxu0 %v444
        %480 = vmatmul.f32.gmra.mxu0 %v440
        %v481 = vpop.f32.mrf.mxu0
        %v482 = vadd.f32 %v462, %v481
        %483 = vmatmul.f32.gmra.mxu0 %v441
        %v484 = vpop.f32.mrf.mxu0
        %v485 = vadd.f32 %v462, %v484
        %486 = vmatmul.f32.gmra.mxu0 %v442
        %v487 = vpop.f32.mrf.mxu0
        %v488 = vadd.f32 %v462, %v487
        %489 = vmatmul.f32.gmra.mxu0 %v443
        %v490 = vpop.f32.mrf.mxu0
        %v491 = vadd.f32 %v462, %v490
        %492 = vdwg.mxu0
        %vm493 = vcmask 64512
        %494 = vst.msk [vmem:[%s318] sm:$0xff] %vm493, %v482
        %495 = vst.msk [vmem:[%s318 + $0x8] sm:$0xff] %vm493, %v485
        %496 = vst.msk [vmem:[%s318 + $0x10] sm:$0xff] %vm493, %v488
        %497 = vst.msk [vmem:[%s318 + $0x18] sm:$0xff] %vm493, %v491
        %s498 = smul.u32 4, %s22
        %p499 = scmp.lt.s32.totalorder %s498, 7
        %s500 = scalar_select %p499, %s498, 7
        %s501 = smul.addr %s500, 8
        %s502 = scalar_lea.vmem %s7, %s501
        // Predicated region
        $region57: #{tpu_custom_call.1} parent=47 // pred_check
          %p503 = pneg %p192
        $region58: #{tpu_custom_call.1} parent=47 // pred_check_branch
          %505 = sbr.rel (%p503) target = $region60
        $region59: #{tpu_custom_call.1} parent=47 // pred_region
          %s506 = smul.u32 4, %s22
        $region60: #{tpu_custom_call.1} parent=47 // pred_fallthru
          _
      $region48: #{tpu_custom_call.1} parent=5 // pred_fallthru
        _
      %p507 = scmp.le.s32.totalorder 2, %s17
      // Predicated region
      $region61: #{tpu_custom_call.1} parent=5 // pred_check
        %p508 = pneg %p507
      $region62: #{tpu_custom_call.1} parent=5 // pred_check_branch
        %510 = sbr.rel (%p508) target = $region64
      $region63: #{tpu_custom_call.1} parent=5 // pred_region
        %s511 = ssub.s32 %s17, 2
        // Predicated region
        $region65: #{tpu_custom_call.1} parent=63 // pred_check
          %p512 = pneg %p198
        $region66: #{tpu_custom_call.1} parent=63 // pred_check_branch
          %514 = sbr.rel (%p512) target = $region68
        $region67: #{tpu_custom_call.1} parent=63 // pred_region
          %s515 = smul.u32 4, %s23
          %p516 = scmp.lt.s32.totalorder %s515, 7
          %s517 = scalar_select %p516, %s515, 7
          %s518 = smul.addr %s517, 8
          %s519 = scalar_lea.vmem %s7, %s518
        $region68: #{tpu_custom_call.1} parent=63 // pred_fallthru
          _
      $region64: #{tpu_custom_call.1} parent=5 // pred_fallthru
        _
    $region6: #{tpu_custom_call.1} parent=1 // loop_footer
      %s21 = sadd.s32 1, %s17
    $region7: #{tpu_custom_call.1} parent=1 // loop_footer_branch
      %16 = sbr.rel target = $region3
    $region8: #{tpu_custom_call.1} parent=1 // loop_exit
      _
    %520 = vsyncpa [#allocation4], 1
    %s521 = scalar_lea.sflag [#allocation4], 1
    %522 = vsyncpa %s521, 1
    %523 = vsyncpa [#allocation6], 1

</llo_original>
